<compile_context>
chip_gen: v5e
topology: v5e:2x2
jax: 0.10.0
libtpu: 0.0.40
codegen_flags: <defaults>
</compile_context>

<pallas_src>
import math

import jax
import jax.numpy as jnp
from jax.experimental import pallas as pl
from jax.experimental.pallas import tpu as pltpu

SIM = 100          # group_change.sim
GCH = SIM + 1      # group_change.gch == 101 (ChannelAttention num_feat)
LCH = 80           # group_change.lch (ChannelAttention mid_ch), memory_blocks=1


# ----------------------------------------------------------------------------
# Pallas kernel: masked full-window structural self-attention (num_heads=1)
# with the ChannelAttention scale fused in.  Per window w of n rows:
#
#   q'_m  = v_m @ Wqk + bqk            Wqk = sc0/sqrt(C) * Wq^T Wk
#                                      bqk = (bq @ Wk)/sqrt(C)
#   s[m,j] = scale[m,j] * <q'_m, v_j>  if j in top-k(m)   (scale = scy[rank])
#          = -1e30                     otherwise (masked)
#   p      = softmax_j(s)
#   O_m    = sum_j p[m,j] * scale[m,j] * v_j
#   out_m  = O_m @ Wo^T + bo
#
# Dropout layers are identity (eval mode).
# TODO(synk): training-mode nn.Dropout (p=0.1) is not reproduced (eval path).
# ----------------------------------------------------------------------------
def masked_window_attn_kernel(v_ref, scale_ref, wqk_ref, bqk_ref, woT_ref,
                              bo_ref, o_ref):
    v = v_ref[...]              # (WB, n, C) f32 — window rows (queries == values)
    scale = scale_ref[...]      # (WB, n, n) f32 — scy[rank] at kept cols, 0 else

    # Folded query projection (tiny MXU matmul).
    qp = jnp.einsum("wnc,cd->wnd", v, wqk_ref[...],
                    preferred_element_type=jnp.float32) + bqk_ref[...]

    # Full-window scores on the MXU, then per-rank CA scale / top-k mask.
    s_raw = jnp.einsum("wqc,wkc->wqk", qp, v,
                       preferred_element_type=jnp.float32)      # (WB, n, n)
    s = jnp.where(scale > 0.0, s_raw * scale, -1e30)

    # Softmax over the key axis; normalization deferred to the output.
    m = jnp.max(s, axis=-1, keepdims=True)
    e = jnp.exp(s - m)
    denom = jnp.sum(e, axis=-1, keepdims=True)                  # (WB, n, 1)

    # O = (p * scale) @ v — masked columns have scale == 0, contribute nothing.
    o_un = jnp.einsum("wqk,wkc->wqc", e * scale, v,
                      preferred_element_type=jnp.float32)       # (WB, n, C)
    o = o_un * pl.reciprocal(denom, approx=True)                # EUP reciprocal

    out = jnp.einsum("wqc,cd->wqd", o, woT_ref[...],
                     preferred_element_type=jnp.float32) + bo_ref[...]
    o_ref[...] = out.astype(o_ref.dtype)


def _choose_windows_per_block(n_win, n, c,
                              max_block_bytes=2 << 20, min_steps=4):
    """Largest divisor WB of n_win such that the grid has >= min_steps steps
    (DMA overlap on single-TC chips, >= 2 steps per TC on v7x) and the block
    stays well under every chip's scoped-VMEM budget."""
    per_win = 4 * (2 * n * c + n * n)          # v in + out + scale, f32
    best = 1
    for wb in range(1, min(n_win, 1024) + 1):
        if n_win % wb:
            continue
        if wb * per_win > max_block_bytes:
            continue
        if n_win // wb < min(min_steps, n_win):
            continue
        best = wb
    return best


def masked_window_attention_pallas(v_win, scale_mat, wqk, bqk, woT, bo):
    Wtot, n, C = v_win.shape
    WB = _choose_windows_per_block(Wtot, n, C)
    grid = (Wtot // WB,)

    return pl.pallas_call(
        masked_window_attn_kernel,
        out_shape=jax.ShapeDtypeStruct((Wtot, n, C), jnp.float32),
        grid_spec=pltpu.PrefetchScalarGridSpec(
            num_scalar_prefetch=0,
            grid=grid,
            in_specs=[
                pl.BlockSpec((WB, n, C), lambda i: (i, 0, 0)),   # window rows v
                pl.BlockSpec((WB, n, n), lambda i: (i, 0, 0)),   # scale / mask
                pl.BlockSpec((C, C), lambda i: (0, 0)),          # Wqk
                pl.BlockSpec((1, C), lambda i: (0, 0)),          # bqk
                pl.BlockSpec((C, C), lambda i: (0, 0)),          # Wo^T
                pl.BlockSpec((1, C), lambda i: (0, 0)),          # bo
            ],
            out_specs=pl.BlockSpec((WB, n, C), lambda i: (i, 0, 0)),
        ),
        compiler_params=pltpu.CompilerParams(
            dimension_semantics=("parallel",)),
    )(v_win, scale_mat, wqk, bqk, woT, bo)


# ----------------------------------------------------------------------------
# group_change forward (glue + Pallas hot path)
#   attn : (B, Nwav, Nwin, 1, n, n)
#   v    : (B, Nwav, Nwin, 1, n, C)
#   out  : (B, Nwav, Nwin, n, C)
# ----------------------------------------------------------------------------
def group_change_forward(params, attn, v, use_pallas=True):
    B, Nw1, Nw2, H, P, n = attn.shape
    assert H == 1 and P == n, "shapes implied by the PyTorch forward"
    assert n >= SIM, "topk needs at least 100 candidates per row"
    C = v.shape[-1]
    Wtot = B * Nw1 * Nw2
    M = Wtot * n

    # torch.topk + scatter + boolean-mask extraction == gather of the top-k
    # rows of v in ascending index order (per query row).
    # TODO(synk): tie-breaking among equal attention values may differ from
    #             torch.topk's ordering.
    _, topk_idx = jax.lax.top_k(attn, SIM)                 # (B,Nw1,Nw2,1,n,SIM)
    idx = jnp.sort(topk_idx[:, :, :, 0], axis=-1)          # (B,Nw1,Nw2,n,SIM)
    v_sq = v[:, :, :, 0]                                   # (B,Nw1,Nw2,n,C)

    if not use_pallas:
        return _group_change_reference(params, idx, v_sq)

    # --- ChannelAttention ("Lowrank") with memory_blocks=1: the memory-block
    # softmax is over a single element and is identically 1, so
    # y2 = sigmoid(upnet(mb^T)) is an input-independent (GCH,) constant.
    y1 = params["ca_mb"][:, 0]                                         # (LCH,)
    y2 = jax.nn.sigmoid(y1 @ params["ca_w_up"].T + params["ca_b_up"])  # (GCH,)
    sc0 = y2[0]                       # scale of the query row (group member 0)
    scy = y2[1:]                      # (SIM,) scales of the 100 similar rows

    # Per-row scale/mask matrix: scatter scy[rank] into the window-index axis.
    # scale_mat[m, idx[m, r]] = scy[r]; 0 at the (n - SIM) masked positions.
    flat_idx = idx.reshape(M, SIM)
    scy_rows = jnp.broadcast_to(scy, (M, SIM))
    scale_mat = jnp.zeros((M, n), jnp.float32).at[
        jnp.arange(M)[:, None], flat_idx].set(scy_rows)
    scale_mat = scale_mat.reshape(Wtot, n, n)

    v_win = v_sq.reshape(Wtot, n, C).astype(jnp.float32)

    # Fold Wk, the query-row CA scale sc0 and 1/sqrt(C) into the query proj.
    inv_sqrt_c = 1.0 / math.sqrt(C)
    wqk = (sc0 * inv_sqrt_c) * (params["wq"].T @ params["wk"])          # (C, C)
    bqk = (inv_sqrt_c * (params["bq"] @ params["wk"])).reshape(1, C)
    woT = params["wo"].T
    bo = params["bo"].reshape(1, C)

    out = masked_window_attention_pallas(v_win, scale_mat, wqk, bqk, woT, bo)
    return out.reshape(B, Nw1, Nw2, n, C)


# ----------------------------------------------------------------------------
# Literal (unfused / unfolded) pure-JAX forward, used only for self-checking
# the algebraic simplifications above.
# ----------------------------------------------------------------------------
def _group_change_reference(params, idx, v_sq):
    B, Nw1, Nw2, n, C = v_sq.shape
    M = B * Nw1 * Nw2 * n

    arr = jnp.broadcast_to(v_sq[:, :, :, None, :, :], (B, Nw1, Nw2, n, n, C))
    idx_b = jnp.broadcast_to(idx[..., None], (B, Nw1, Nw2, n, SIM, C))
    gathered = jnp.take_along_axis(arr, idx_b, axis=4)      # (B,Nw1,Nw2,n,SIM,C)
    group3D = jnp.concatenate(
        [v_sq[:, :, :, :, None, :], gathered], axis=4)      # (B,Nw1,Nw2,n,GCH,C)

    # literal ChannelAttention (memory_blocks=1)
    t = group3D.reshape(M, GCH, C)
    y = jnp.mean(t, axis=-1)                                # AdaptiveAvgPool1d(1)
    low = (y @ params["ca_w_sub"].T + params["ca_b_sub"])[:, :, None]   # (M,80,1)
    mbg = jnp.broadcast_to(params["ca_mb"][None], (M, LCH, 1))          # (M,80,1)
    f1 = jnp.swapaxes(low, 1, 2) @ mbg                                  # (M,1,1)
    f_dic = jax.nn.softmax(f1 * (LCH ** -0.5), axis=-1)
    y1 = f_dic @ jnp.swapaxes(mbg, 1, 2)                                # (M,1,80)
    y2 = jax.nn.sigmoid(y1 @ params["ca_w_up"].T + params["ca_b_up"])   # (M,1,GCH)
    group3D_s = t * jnp.swapaxes(y2, 1, 2)                              # (M,GCH,C)

    # literal StructuralSelfAttention (num_heads=1)
    xq = group3D_s[:, 0, :]
    yv = group3D_s[:, 1:, :]
    q = xq @ params["wq"].T + params["bq"]
    k = jnp.einsum("mkc,oc->mko", yv, params["wk"]) + params["bk"]
    s = jnp.einsum("mc,mkc->mk", q, k) / math.sqrt(C)
    p = jax.nn.softmax(s, axis=-1)
    o = jnp.einsum("mk,mkc->mc", p, yv)
    out = o @ params["wo"].T + params["bo"]
    return out.reshape(B, Nw1, Nw2, n, C)


# ----------------------------------------------------------------------------
# Deterministic parameter init (shapes from the module __init__).
# ----------------------------------------------------------------------------
def init_params(key, c):
    ks = jax.random.split(key, 11)
    s = 0.05
    return dict(
        # ChannelAttention(num_feat=101, mid_ch=80, memory_blocks=1)
        ca_w_sub=jax.random.normal(ks[0], (LCH, GCH), jnp.float32) * s,
        ca_b_sub=jax.random.normal(ks[1], (LCH,), jnp.float32) * s,
        ca_w_up=jax.random.normal(ks[2], (GCH, LCH), jnp.float32) * s,
        ca_b_up=jax.random.normal(ks[3], (GCH,), jnp.float32) * s,
        ca_mb=jax.random.normal(ks[4], (LCH, 1), jnp.float32),
        # StructuralSelfAttention(embed_dim=c, num_heads=1)
        wq=jax.random.normal(ks[5], (c, c), jnp.float32) * s,
        bq=jax.random.normal(ks[6], (c,), jnp.float32) * s,
        wk=jax.random.normal(ks[7], (c, c), jnp.float32) * s,
        bk=jax.random.normal(ks[8], (c,), jnp.float32) * s,
        wo=jax.random.normal(ks[9], (c, c), jnp.float32) * s,
        bo=jax.random.normal(ks[10], (c,), jnp.float32) * s,
    )


if __name__ == "__main__":
    key = jax.random.PRNGKey(0)
    k_attn, k_v, k_p = jax.random.split(key, 3)

    # Small shapes consistent with the module (topk needs last dim >= 100).
    B, NWAV, NWIN, N, C = 1, 2, 2, 104, 32   # group_change(d=32)
    attn = jax.random.normal(k_attn, (B, NWAV, NWIN, 1, N, N), jnp.float32)
    v = jax.random.normal(k_v, (B, NWAV, NWIN, 1, N, C), jnp.float32)
    params = init_params(k_p, C)

    fwd = jax.jit(group_change_forward, static_argnames=("use_pallas",))
    out = jax.block_until_ready(fwd(params, attn, v, use_pallas=True))

    # Self-check against the literal (unfused, unfolded) pure-JAX forward.
    out_ref = jax.block_until_ready(fwd(params, attn, v, use_pallas=False))
    assert out.shape == (B, NWAV, NWIN, N, C)
    tol = 5e-3
    max_err = float(jnp.max(jnp.abs(out - out_ref)))
    assert jnp.allclose(out, out_ref, atol=tol, rtol=tol), max_err

    print("KERNEL_OK")
</pallas_src>

<mosaic_0001>
module attributes {stable_mosaic.version = 11 : i64} {
  func.func @masked_window_attn_kernel(%arg0: i32, %arg1: memref<1x104x32xf32, #tpu.memory_space<vmem>>, %arg2: memref<1x104x104xf32, #tpu.memory_space<vmem>>, %arg3: memref<32x32xf32, #tpu.memory_space<vmem>>, %arg4: memref<1x32xf32, #tpu.memory_space<vmem>>, %arg5: memref<32x32xf32, #tpu.memory_space<vmem>>, %arg6: memref<1x32xf32, #tpu.memory_space<vmem>>, %arg7: memref<1x104x32xf32, #tpu.memory_space<vmem>>) attributes {dimension_semantics = [#tpu.dimension_semantics<parallel>], iteration_bounds = array<i64: 4>, scalar_prefetch = 0 : i64, scratch_operands = 0 : i64, tpu.core_type = #tpu.core_type<tc>, window_params = [{transform_indices = @transform_0, window_bounds = array<i64: 1, 104, 32>}, {transform_indices = @transform_1, window_bounds = array<i64: 1, 104, 104>}, {pipeline_mode = #tpu.pipeline_mode<synchronous>, transform_indices = @transform_2, window_bounds = array<i64: 32, 32>}, {pipeline_mode = #tpu.pipeline_mode<synchronous>, transform_indices = @transform_3, window_bounds = array<i64: 1, 32>}, {pipeline_mode = #tpu.pipeline_mode<synchronous>, transform_indices = @transform_4, window_bounds = array<i64: 32, 32>}, {pipeline_mode = #tpu.pipeline_mode<synchronous>, transform_indices = @transform_5, window_bounds = array<i64: 1, 32>}, {transform_indices = @transform_6, window_bounds = array<i64: 1, 104, 32>}]} {
    %c0 = arith.constant 0 : index
    %c0_0 = arith.constant 0 : index
    %c0_1 = arith.constant 0 : index
    %0 = vector.load %arg1[%c0, %c0_0, %c0_1] : memref<1x104x32xf32, #tpu.memory_space<vmem>>, vector<1x104x32xf32>
    %c0_2 = arith.constant 0 : index
    %c0_3 = arith.constant 0 : index
    %c0_4 = arith.constant 0 : index
    %1 = vector.load %arg2[%c0_2, %c0_3, %c0_4] : memref<1x104x104xf32, #tpu.memory_space<vmem>>, vector<1x104x104xf32>
    %c0_5 = arith.constant 0 : index
    %c0_6 = arith.constant 0 : index
    %2 = vector.load %arg3[%c0_5, %c0_6] : memref<32x32xf32, #tpu.memory_space<vmem>>, vector<32x32xf32>
    "tpu.trace_start"() <{level = 10 : i32, message = "wnc,cd->wnd"}> : () -> ()
    %cst = arith.constant dense<0.000000e+00> : vector<1x104x32xf32>
    %3 = tpu.matmul %0, %2, %cst {dimension_numbers = #tpu.dot_dimension_numbers<[2], [0], [0, 1], [1], [0, 0, 0, 1, 1, 1], [], []>} : vector<1x104x32xf32>, vector<32x32xf32>, vector<1x104x32xf32> -> vector<1x104x32xf32>
    "tpu.trace_stop"() : () -> ()
    %c0_7 = arith.constant 0 : index
    %c0_8 = arith.constant 0 : index
    %4 = vector.load %arg4[%c0_7, %c0_8] : memref<1x32xf32, #tpu.memory_space<vmem>>, vector<1x32xf32>
    %5 = vector.shape_cast %4 : vector<1x32xf32> to vector<1x1x32xf32>
    %6 = vector.broadcast %5 : vector<1x1x32xf32> to vector<1x104x32xf32>
    %7 = arith.addf %3, %6 : vector<1x104x32xf32>
    "tpu.trace_start"() <{level = 10 : i32, message = "wqc,wkc->wqk"}> : () -> ()
    %cst_9 = arith.constant dense<0.000000e+00> : vector<1x104x104xf32>
    %8 = tpu.matmul %7, %0, %cst_9 {dimension_numbers = #tpu.dot_dimension_numbers<[2], [2], [1], [1], [0, 0, 0, 1, 1, 1], [0], [0]>} : vector<1x104x32xf32>, vector<1x104x32xf32>, vector<1x104x104xf32> -> vector<1x104x104xf32>
    %cst_10 = arith.constant 0.000000e+00 : f32
    "tpu.trace_stop"() : () -> ()
    %9 = vector.broadcast %cst_10 : f32 to vector<1x104x104xf32>
    %10 = arith.cmpf ogt, %1, %9 : vector<1x104x104xf32>
    %11 = arith.mulf %8, %1 : vector<1x104x104xf32>
    %cst_11 = arith.constant -1.000000e+30 : f32
    %12 = vector.broadcast %cst_11 : f32 to vector<1x104x104xf32>
    %13 = arith.select %10, %11, %12 : vector<1x104x104xi1>, vector<1x104x104xf32>
    %cst_12 = arith.constant dense<0xFF800000> : vector<1x104xf32>
    %14 = vector.multi_reduction <maximumf>, %13, %cst_12 [2] : vector<1x104x104xf32> to vector<1x104xf32>
    %15 = vector.shape_cast %14 : vector<1x104xf32> to vector<1x104x1xf32>
    %16 = vector.broadcast %15 : vector<1x104x1xf32> to vector<1x104x104xf32>
    %17 = arith.subf %13, %16 : vector<1x104x104xf32>
    %18 = math.exp %17 : vector<1x104x104xf32>
    %cst_13 = arith.constant dense<0.000000e+00> : vector<1x104xf32>
    %19 = vector.multi_reduction <add>, %18, %cst_13 [2] : vector<1x104x104xf32> to vector<1x104xf32>
    %20 = vector.shape_cast %19 : vector<1x104xf32> to vector<1x104x1xf32>
    %21 = arith.mulf %18, %1 : vector<1x104x104xf32>
    "tpu.trace_start"() <{level = 10 : i32, message = "wqk,wkc->wqc"}> : () -> ()
    %cst_14 = arith.constant dense<0.000000e+00> : vector<1x104x32xf32>
    %22 = tpu.matmul %21, %0, %cst_14 {dimension_numbers = #tpu.dot_dimension_numbers<[2], [1], [1], [2], [0, 0, 0, 1, 1, 2], [0], [0]>} : vector<1x104x104xf32>, vector<1x104x32xf32>, vector<1x104x32xf32> -> vector<1x104x32xf32>
    "tpu.trace_stop"() : () -> ()
    %23 = tpu.reciprocal %20 {approx = true} : vector<1x104x1xf32> -> vector<1x104x1xf32>
    %24 = vector.broadcast %23 : vector<1x104x1xf32> to vector<1x104x32xf32>
    %25 = arith.mulf %22, %24 : vector<1x104x32xf32>
    %c0_15 = arith.constant 0 : index
    %c0_16 = arith.constant 0 : index
    %26 = vector.load %arg5[%c0_15, %c0_16] : memref<32x32xf32, #tpu.memory_space<vmem>>, vector<32x32xf32>
    "tpu.trace_start"() <{level = 10 : i32, message = "wqc,cd->wqd"}> : () -> ()
    %cst_17 = arith.constant dense<0.000000e+00> : vector<1x104x32xf32>
    %27 = tpu.matmul %25, %26, %cst_17 {dimension_numbers = #tpu.dot_dimension_numbers<[2], [0], [0, 1], [1], [0, 0, 0, 1, 1, 1], [], []>} : vector<1x104x32xf32>, vector<32x32xf32>, vector<1x104x32xf32> -> vector<1x104x32xf32>
    "tpu.trace_stop"() : () -> ()
    %c0_18 = arith.constant 0 : index
    %c0_19 = arith.constant 0 : index
    %28 = vector.load %arg6[%c0_18, %c0_19] : memref<1x32xf32, #tpu.memory_space<vmem>>, vector<1x32xf32>
    %29 = vector.shape_cast %28 : vector<1x32xf32> to vector<1x1x32xf32>
    %30 = vector.broadcast %29 : vector<1x1x32xf32> to vector<1x104x32xf32>
    %31 = arith.addf %27, %30 : vector<1x104x32xf32>
    %c0_20 = arith.constant 0 : index
    %c0_21 = arith.constant 0 : index
    %c0_22 = arith.constant 0 : index
    %32 = vector.load %arg7[%c0_20, %c0_21, %c0_22] : memref<1x104x32xf32, #tpu.memory_space<vmem>>, vector<1x104x32xf32>
    tpu.vector_store %arg7[%c0_20, %c0_21, %c0_22], %31 {strides = array<i32>} : memref<1x104x32xf32, #tpu.memory_space<vmem>>, vector<1x104x32xf32>,
    return
  }
  func.func @transform_0(%arg0: i32) -> (i32, i32, i32) {
    %c0_i32 = arith.constant 0 : i32
    %c0_i32_0 = arith.constant 0 : i32
    %c0_i32_1 = arith.constant 0 : i32
    return %arg0, %c0_i32, %c0_i32_0 : i32, i32, i32
  }
  func.func @transform_1(%arg0: i32) -> (i32, i32, i32) {
    %c0_i32 = arith.constant 0 : i32
    %c0_i32_0 = arith.constant 0 : i32
    %c0_i32_1 = arith.constant 0 : i32
    return %arg0, %c0_i32, %c0_i32_0 : i32, i32, i32
  }
  func.func @transform_2(%arg0: i32) -> (i32, i32) {
    %c0_i32 = arith.constant 0 : i32
    %c0_i32_0 = arith.constant 0 : i32
    %c0_i32_1 = arith.constant 0 : i32
    return %c0_i32, %c0_i32_0 : i32, i32
  }
  func.func @transform_3(%arg0: i32) -> (i32, i32) {
    %c0_i32 = arith.constant 0 : i32
    %c0_i32_0 = arith.constant 0 : i32
    %c0_i32_1 = arith.constant 0 : i32
    return %c0_i32, %c0_i32_0 : i32, i32
  }
  func.func @transform_4(%arg0: i32) -> (i32, i32) {
    %c0_i32 = arith.constant 0 : i32
    %c0_i32_0 = arith.constant 0 : i32
    %c0_i32_1 = arith.constant 0 : i32
    return %c0_i32, %c0_i32_0 : i32, i32
  }
  func.func @transform_5(%arg0: i32) -> (i32, i32) {
    %c0_i32 = arith.constant 0 : i32
    %c0_i32_0 = arith.constant 0 : i32
    %c0_i32_1 = arith.constant 0 : i32
    return %c0_i32, %c0_i32_0 : i32, i32
  }
  func.func @transform_6(%arg0: i32) -> (i32, i32, i32) {
    %c0_i32 = arith.constant 0 : i32
    %c0_i32_0 = arith.constant 0 : i32
    %c0_i32_1 = arith.constant 0 : i32
    return %arg0, %c0_i32, %c0_i32_0 : i32, i32, i32
  }
}

</mosaic_0001>

<llo_original>
// kernel: group_change_forward.1
$region0: #{group_change_forward.1}
  #allocation0 [shape = 'u32[]', space=smem, size = 0x4, offset = 0x4, fixed_abs, tag = 'smem constant byte address 0x4 - core index']
  #allocation1 [shape = 'u32[72,128]{1,0:T(1,128)}', space=vmem, size = 0x9000, scoped, tag = 'internal scratch']
  %s0 = inlined_call_operand.vmem [shape: f32[4,104,32], index: 0, kind: input, shape index: {}]
  %s1 = inlined_call_operand.vmem [shape: f32[4,104,104], index: 1, kind: input, shape index: {}]
  %s2 = inlined_call_operand.vmem [shape: f32[32,32], index: 2, kind: input, shape index: {}]
  %s3 = inlined_call_operand.vmem [shape: f32[1,32], index: 3, kind: input, shape index: {}]
  %s4 = inlined_call_operand.vmem [shape: f32[32,32], index: 4, kind: input, shape index: {}]
  %s5 = inlined_call_operand.vmem [shape: f32[1,32], index: 5, kind: input, shape index: {}]
  %s6 = inlined_call_operand.vmem [shape: f32[4,104,32], index: 6, kind: output, shape index: {}]
  %s7 = sld [smem:[#allocation0]]
  $region57: #{group_change_forward.1} parent=0
    _
  %s9 = ssub.s32 1, %s7
  %s10 = scalar_select 0, %s9, %s7
  loop: start=0, step=1, limit=6
  $region2: #{group_change_forward.1} parent=0 // loop_pre_header
    _
  $region3: #{group_change_forward.1} parent=0 // loop_header
    %s12 = sphi 0, %s16
    %p13 = scmp.ge.s32.totalorder %s12, 6
    %s22 = sphi 0, %s24
    %s25 = sphi 0, %s22
    %s26 = sphi 0, %s25
    %s42 = sphi 0, %s26
    %s48 = sphi 0, %s50
    %s51 = sphi 0, %s48
    %s52 = sphi 0, %s51
    %s68 = sphi 0, %s52
    %s72 = sphi 0, %s72
    %s74 = sphi 0, %s72
    %s75 = sphi 0, %s74
    %s89 = sphi 0, %s75
    %s93 = sphi 0, %s93
    %s95 = sphi 0, %s93
    %s96 = sphi 0, %s95
    %s110 = sphi 0, %s96
    %s114 = sphi 0, %s114
    %s116 = sphi 0, %s114
    %s117 = sphi 0, %s116
    %s131 = sphi 0, %s117
    %s135 = sphi 0, %s135
    %s137 = sphi 0, %s135
    %s138 = sphi 0, %s137
    %s152 = sphi 0, %s138
    %s158 = sphi 0, %s160
    %s161 = sphi 0, %s158
    %s162 = sphi 0, %s161
    %s178 = sphi 0, %s162
  $region4: #{group_change_forward.1} parent=0 // loop_header_branch
    %15 = sbr.rel (%p13) target = $region8
  $region5: #{group_change_forward.1} parent=0 // loop_body
    %s17 = ssub.s32 %s12, 1
    %s18 = ssub.s32 %s12, 2
    %s19 = sadd.s32 %s12, 1
    %s20 = ssub.s32 %s12, %s19
    %p21 = scmp.eq.s32.totalorder %s20, 0
    %s23 = sadd.s32 %s22, 1
    %s24 = scalar_select %p21, %s22, %s23
    %p27 = pneg %p21
    %p28 = scmp.eq.s32.totalorder %s12, 3
    %p29 = por %p27, %p28
    %p30 = scmp.ne.s32.totalorder %s22, %s25
    %p31 = scmp.eq.s32.totalorder %s12, 0
    %p32 = por %p30, %p31
    %p33 = scmp.ne.s32.totalorder %s22, %s25
    %p34 = scmp.eq.s32.totalorder %s17, 3
    %p35 = por %p33, %p34
    %p36 = scmp.ne.s32.totalorder %s25, %s26
    %p37 = scmp.eq.s32.totalorder %s17, 0
    %p38 = por %p36, %p37
    %p39 = scmp.ne.s32.totalorder %s25, %s26
    %p40 = scmp.eq.s32.totalorder %s18, 3
    %p41 = por %p39, %p40
    %p43 = scmp.ne.s32.totalorder %s26, %s42
    %p44 = scmp.eq.s32.totalorder %s18, 0
    %p45 = por %p43, %p44
    %s46 = ssub.s32 %s12, %s19
    %p47 = scmp.eq.s32.totalorder %s46, 0
    %s49 = sadd.s32 %s48, 1
    %s50 = scalar_select %p47, %s48, %s49
    %p53 = pneg %p47
    %p54 = scmp.eq.s32.totalorder %s12, 3
    %p55 = por %p53, %p54
    %p56 = scmp.ne.s32.totalorder %s48, %s51
    %p57 = scmp.eq.s32.totalorder %s12, 0
    %p58 = por %p56, %p57
    %p59 = scmp.ne.s32.totalorder %s48, %s51
    %p60 = scmp.eq.s32.totalorder %s17, 3
    %p61 = por %p59, %p60
    %p62 = scmp.ne.s32.totalorder %s51, %s52
    %p63 = scmp.eq.s32.totalorder %s17, 0
    %p64 = por %p62, %p63
    %p65 = scmp.ne.s32.totalorder %s51, %s52
    %p66 = scmp.eq.s32.totalorder %s18, 3
    %p67 = por %p65, %p66
    %p69 = scmp.ne.s32.totalorder %s52, %s68
    %p70 = scmp.eq.s32.totalorder %s18, 0
    %p71 = por %p69, %p70
    %s73 = sadd.s32 %s72, 1
    %p76 = scmp.eq.s32.totalorder %s12, 3
    %p77 = scmp.ne.s32.totalorder %s72, %s74
    %p78 = scmp.eq.s32.totalorder %s12, 0
    %p79 = por %p77, %p78
    %p80 = scmp.ne.s32.totalorder %s72, %s74
    %p81 = scmp.eq.s32.totalorder %s17, 3
    %p82 = por %p80, %p81
    %p83 = scmp.ne.s32.totalorder %s74, %s75
    %p84 = scmp.eq.s32.totalorder %s17, 0
    %p85 = por %p83, %p84
    %p86 = scmp.ne.s32.totalorder %s74, %s75
    %p87 = scmp.eq.s32.totalorder %s18, 3
    %p88 = por %p86, %p87
    %p90 = scmp.ne.s32.totalorder %s75, %s89
    %p91 = scmp.eq.s32.totalorder %s18, 0
    %p92 = por %p90, %p91
    %s94 = sadd.s32 %s93, 1
    %p97 = scmp.eq.s32.totalorder %s12, 3
    %p98 = scmp.ne.s32.totalorder %s93, %s95
    %p99 = scmp.eq.s32.totalorder %s12, 0
    %p100 = por %p98, %p99
    %p101 = scmp.ne.s32.totalorder %s93, %s95
    %p102 = scmp.eq.s32.totalorder %s17, 3
    %p103 = por %p101, %p102
    %p104 = scmp.ne.s32.totalorder %s95, %s96
    %p105 = scmp.eq.s32.totalorder %s17, 0
    %p106 = por %p104, %p105
    %p107 = scmp.ne.s32.totalorder %s95, %s96
    %p108 = scmp.eq.s32.totalorder %s18, 3
    %p109 = por %p107, %p108
    %p111 = scmp.ne.s32.totalorder %s96, %s110
    %p112 = scmp.eq.s32.totalorder %s18, 0
    %p113 = por %p111, %p112
    %s115 = sadd.s32 %s114, 1
    %p118 = scmp.eq.s32.totalorder %s12, 3
    %p119 = scmp.ne.s32.totalorder %s114, %s116
    %p120 = scmp.eq.s32.totalorder %s12, 0
    %p121 = por %p119, %p120
    %p122 = scmp.ne.s32.totalorder %s114, %s116
    %p123 = scmp.eq.s32.totalorder %s17, 3
    %p124 = por %p122, %p123
    %p125 = scmp.ne.s32.totalorder %s116, %s117
    %p126 = scmp.eq.s32.totalorder %s17, 0
    %p127 = por %p125, %p126
    %p128 = scmp.ne.s32.totalorder %s116, %s117
    %p129 = scmp.eq.s32.totalorder %s18, 3
    %p130 = por %p128, %p129
    %p132 = scmp.ne.s32.totalorder %s117, %s131
    %p133 = scmp.eq.s32.totalorder %s18, 0
    %p134 = por %p132, %p133
    %s136 = sadd.s32 %s135, 1
    %p139 = scmp.eq.s32.totalorder %s12, 3
    %p140 = scmp.ne.s32.totalorder %s135, %s137
    %p141 = scmp.eq.s32.totalorder %s12, 0
    %p142 = por %p140, %p141
    %p143 = scmp.ne.s32.totalorder %s135, %s137
    %p144 = scmp.eq.s32.totalorder %s17, 3
    %p145 = por %p143, %p144
    %p146 = scmp.ne.s32.totalorder %s137, %s138
    %p147 = scmp.eq.s32.totalorder %s17, 0
    %p148 = por %p146, %p147
    %p149 = scmp.ne.s32.totalorder %s137, %s138
    %p150 = scmp.eq.s32.totalorder %s18, 3
    %p151 = por %p149, %p150
    %p153 = scmp.ne.s32.totalorder %s138, %s152
    %p154 = scmp.eq.s32.totalorder %s18, 0
    %p155 = por %p153, %p154
    %s156 = ssub.s32 %s12, %s19
    %p157 = scmp.eq.s32.totalorder %s156, 0
    %s159 = sadd.s32 %s158, 1
    %s160 = scalar_select %p157, %s158, %s159
    %p163 = pneg %p157
    %p164 = scmp.eq.s32.totalorder %s12, 3
    %p165 = por %p163, %p164
    %p166 = scmp.ne.s32.totalorder %s158, %s161
    %p167 = scmp.eq.s32.totalorder %s12, 0
    %p168 = por %p166, %p167
    %p169 = scmp.ne.s32.totalorder %s158, %s161
    %p170 = scmp.eq.s32.totalorder %s17, 3
    %p171 = por %p169, %p170
    %p172 = scmp.ne.s32.totalorder %s161, %s162
    %p173 = scmp.eq.s32.totalorder %s17, 0
    %p174 = por %p172, %p173
    %p175 = scmp.ne.s32.totalorder %s161, %s162
    %p176 = scmp.eq.s32.totalorder %s18, 3
    %p177 = por %p175, %p176
    %p179 = scmp.ne.s32.totalorder %s162, %s178
    %p180 = scmp.eq.s32.totalorder %s18, 0
    %p181 = por %p179, %p180
    %p182 = scmp.le.s32.totalorder 1, %s12
    %p183 = scmp.lt.s32.totalorder %s12, 5
    %p184 = pnand %p182, %p183
    %p185 = pneg %p184
    // Predicated region
    $region9: #{group_change_forward.1} parent=5 // pred_check
      _
    $region10: #{group_change_forward.1} parent=5 // pred_check_branch
      %187 = sbr.rel (%p184) target = $region12
    $region11: #{group_change_forward.1} parent=5 // pred_region
      %s188 = ssub.s32 %s12, 1
      // Predicated region
      $region13: #{group_change_forward.1} parent=11 // pred_check
        %p189 = pneg %p85
      $region14: #{group_change_forward.1} parent=11 // pred_check_branch
        %191 = sbr.rel (%p189) target = $region16
      $region15: #{group_change_forward.1} parent=11 // pred_region
        _
      $region16: #{group_change_forward.1} parent=11 // pred_fallthru
        _
      // Predicated region
      $region17: #{group_change_forward.1} parent=11 // pred_check
        %p192 = pneg %p106
      $region18: #{group_change_forward.1} parent=11 // pred_check_branch
        %194 = sbr.rel (%p192) target = $region20
      $region19: #{group_change_forward.1} parent=11 // pred_region
        _
      $region20: #{group_change_forward.1} parent=11 // pred_fallthru
        _
      // Predicated region
      $region21: #{group_change_forward.1} parent=11 // pred_check
        %p195 = pneg %p127
      $region22: #{group_change_forward.1} parent=11 // pred_check_branch
        %197 = sbr.rel (%p195) target = $region24
      $region23: #{group_change_forward.1} parent=11 // pred_region
        _
      $region24: #{group_change_forward.1} parent=11 // pred_fallthru
        _
      // Predicated region
      $region25: #{group_change_forward.1} parent=11 // pred_check
        %p198 = pneg %p148
      $region26: #{group_change_forward.1} parent=11 // pred_check_branch
        %200 = sbr.rel (%p198) target = $region28
      $region27: #{group_change_forward.1} parent=11 // pred_region
        _
      $region28: #{group_change_forward.1} parent=11 // pred_fallthru
        _
    $region12: #{group_change_forward.1} parent=5 // pred_fallthru
      _
    %p201 = scmp.lt.s32.totalorder %s12, 4
    // Predicated region
    $region29: #{group_change_forward.1} parent=5 // pred_check
      %p202 = pneg %p201
    $region30: #{group_change_forward.1} parent=5 // pred_check_branch
      %204 = sbr.rel (%p202) target = $region32
    $region31: #{group_change_forward.1} parent=5 // pred_region
      // Predicated region
      $region33: #{group_change_forward.1} parent=31 // pred_check
        %p205 = pneg %p32
      $region34: #{group_change_forward.1} parent=31 // pred_check_branch
        %207 = sbr.rel (%p205) target = $region36
      $region35: #{group_change_forward.1} parent=31 // pred_region
        %p208 = scmp.lt.s32.totalorder %s12, 3
        %s209 = scalar_select %p208, %s12, 3
        %s210 = smul.addr %s209, 13
        %s211 = smul.addr %s210, 8
        %s212 = scalar_lea.vmem %s0, %s211
      $region36: #{group_change_forward.1} parent=31 // pred_fallthru
        _
      // Predicated region
      $region37: #{group_change_forward.1} parent=31 // pred_check
        %p213 = pneg %p58
      $region38: #{group_change_forward.1} parent=31 // pred_check_branch
        %215 = sbr.rel (%p213) target = $region40
      $region39: #{group_change_forward.1} parent=31 // pred_region
        %p216 = scmp.lt.s32.totalorder %s12, 3
        %s217 = scalar_select %p216, %s12, 3
        %s218 = smul.addr %s217, 13
        %s219 = smul.addr %s218, 8
        %s220 = scalar_lea.vmem %s1, %s219
      $region40: #{group_change_forward.1} parent=31 // pred_fallthru
        _
    $region32: #{group_change_forward.1} parent=5 // pred_fallthru
      _
    %p221 = scmp.le.s32.totalorder 1, %s12
    %p222 = scmp.lt.s32.totalorder %s12, 5
    %p223 = pnand %p221, %p222
    %p224 = pneg %p223
    // Predicated region
    $region41: #{group_change_forward.1} parent=5 // pred_check
      _
    $region42: #{group_change_forward.1} parent=5 // pred_check_branch
      %226 = sbr.rel (%p223) target = $region44
    $region43: #{group_change_forward.1} parent=5 // pred_region
      %s227 = ssub.s32 %s12, 1
      %p228 = scmp.lt.s32.totalorder %s17, 3
      %s229 = scalar_select %p228, %s17, 3
      %s230 = smul.addr %s229, 13
      %s231 = smul.addr %s230, 8
      %s232 = scalar_lea.vmem %s0, %s231
      %p233 = pneg %p38
      %p234 = pneg %p35
      %p235 = scmp.lt.s32.totalorder %s17, 3
      %s236 = scalar_select %p235, %s17, 3
      %s237 = smul.addr %s236, 13
      %s238 = smul.addr %s237, 8
      %s239 = scalar_lea.vmem %s1, %s238
      %p240 = pneg %p64
      %p241 = pneg %p61
      %p242 = pneg %p85
      %p243 = pneg %p82
      %p244 = pneg %p106
      %p245 = pneg %p103
      %p246 = pneg %p127
      %p247 = pneg %p124
      %p248 = pneg %p148
      %p249 = pneg %p145
      %p250 = pneg %p174
      %p251 = pneg %p171
      %p252 = scmp.lt.s32.totalorder %s17, 3
      %s253 = scalar_select %p252, %s17, 3
      %s254 = smul.addr %s253, 13
      %s255 = smul.addr %s254, 8
      %s256 = scalar_lea.vmem %s6, %s255
      %p257 = scmp.lt.s32.totalorder %s17, 3
      %s258 = scalar_select %p257, %s17, 3
      %s259 = smul.addr %s258, 13
      %s260 = smul.addr %s259, 8
      %s261 = scalar_lea.vmem %s0, %s260
      %p262 = scmp.lt.s32.totalorder %s17, 3
      %s263 = scalar_select %p262, %s17, 3
      %s264 = smul.addr %s263, 13
      %s265 = smul.addr %s264, 8
      %s266 = scalar_lea.vmem %s1, %s265
      %p267 = scmp.lt.s32.totalorder %s17, 3
      %s268 = scalar_select %p267, %s17, 3
      %s269 = smul.addr %s268, 13
      %s270 = smul.addr %s269, 8
      %s271 = scalar_lea.vmem %s6, %s270
      %v272 = vld [vmem:[%s261] sm:$0xff]
      %v273 = vld [vmem:[%s261 + $0x8] sm:$0xff]
      %v274 = vld [vmem:[%s261 + $0x10] sm:$0xff]
      %v275 = vld [vmem:[%s261 + $0x18] sm:$0xff]
      %v276 = vld [vmem:[%s261 + $0x20] sm:$0xff]
      %v277 = vld [vmem:[%s261 + $0x28] sm:$0xff]
      %v278 = vld [vmem:[%s261 + $0x30] sm:$0xff]
      %v279 = vld [vmem:[%s261 + $0x38] sm:$0xff]
      %v280 = vld [vmem:[%s261 + $0x40] sm:$0xff]
      %v281 = vld [vmem:[%s261 + $0x48] sm:$0xff]
      %v282 = vld [vmem:[%s261 + $0x50] sm:$0xff]
      %v283 = vld [vmem:[%s261 + $0x58] sm:$0xff]
      %v284 = vld [vmem:[%s261 + $0x60] sm:$0xff]
      %v285 = vld [vmem:[%s266] sm:$0xff]
      %v286 = vld [vmem:[%s266 + $0x8] sm:$0xff]
      %v287 = vld [vmem:[%s266 + $0x10] sm:$0xff]
      %v288 = vld [vmem:[%s266 + $0x18] sm:$0xff]
      %v289 = vld [vmem:[%s266 + $0x20] sm:$0xff]
      %v290 = vld [vmem:[%s266 + $0x28] sm:$0xff]
      %v291 = vld [vmem:[%s266 + $0x30] sm:$0xff]
      %v292 = vld [vmem:[%s266 + $0x38] sm:$0xff]
      %v293 = vld [vmem:[%s266 + $0x40] sm:$0xff]
      %v294 = vld [vmem:[%s266 + $0x48] sm:$0xff]
      %v295 = vld [vmem:[%s266 + $0x50] sm:$0xff]
      %v296 = vld [vmem:[%s266 + $0x58] sm:$0xff]
      %v297 = vld [vmem:[%s266 + $0x60] sm:$0xff]
      %v298 = vld [vmem:[%s2] sm:$0xff]
      %v299 = vld [vmem:[%s2 + $0x8] sm:$0xff]
      %v300 = vld [vmem:[%s2 + $0x10] sm:$0xff]
      %v301 = vld [vmem:[%s2 + $0x18] sm:$0xff]
      %v302 = vld [vmem:[%s3] sm:$0x1]
      %v304 = vperm.slane %v302, 0
      %vm306 = vcmask 261120
      %v308 = vsel %vm306, %v272, 0
      %v311 = vsel %vm306, %v273, 0
      %v314 = vsel %vm306, %v274, 0
      %v317 = vsel %vm306, %v275, 0
      %v320 = vsel %vm306, %v276, 0
      %v323 = vsel %vm306, %v277, 0
      %v326 = vsel %vm306, %v278, 0
      %v329 = vsel %vm306, %v279, 0
      %v332 = vsel %vm306, %v280, 0
      %v335 = vsel %vm306, %v281, 0
      %v338 = vsel %vm306, %v282, 0
      %v341 = vsel %vm306, %v283, 0
      %v344 = vsel %vm306, %v284, 0
      %346 = vmatpush.msra.mxu0 0.0
      %347 = vmatpush.msra.mxu0 0.0
      %348 = vmatpush.msra.mxu0 0.0
      %349 = vmatpush.msra.mxu0 0.0
      %350 = vmatpush.msra.mxu0 0.0
      %351 = vmatpush.msra.mxu0 0.0
      %352 = vmatpush.msra.mxu0 0.0
      %353 = vmatpush.msra.mxu0 0.0
      %354 = vmatpush.msra.mxu0 0.0
      %355 = vmatpush.msra.mxu0 0.0
      %356 = vmatpush.msra.mxu0 0.0
      %357 = vmatpush.msra.mxu0 0.0
      %358 = vmatpush.msra.mxu0 %v301
      %359 = vmatpush.msra.mxu0 %v300
      %360 = vmatpush.msra.mxu0 %v299
      %361 = vmatpush.msra.mxu0 %v298
      %362 = vmatmul.f32.gmra.mxu0 %v308
      %v363 = vpop.f32.mrf.mxu0
      %v364 = vadd.f32 %v304, %v363
      %365 = vmatmul.f32.gmra.mxu0 %v311
      %v366 = vpop.f32.mrf.mxu0
      %v367 = vadd.f32 %v304, %v366
      %368 = vmatmul.f32.gmra.mxu0 %v314
      %v369 = vpop.f32.mrf.mxu0
      %v370 = vadd.f32 %v304, %v369
      %371 = vmatmul.f32.gmra.mxu0 %v317
      %v372 = vpop.f32.mrf.mxu0
      %v373 = vadd.f32 %v304, %v372
      %374 = vmatmul.f32.gmra.mxu0 %v320
      %v375 = vpop.f32.mrf.mxu0
      %v376 = vadd.f32 %v304, %v375
      %377 = vmatmul.f32.gmra.mxu0 %v323
      %v378 = vpop.f32.mrf.mxu0
      %v379 = vadd.f32 %v304, %v378
      %380 = vmatmul.f32.gmra.mxu0 %v326
      %v381 = vpop.f32.mrf.mxu0
      %v382 = vadd.f32 %v304, %v381
      %383 = vmatmul.f32.gmra.mxu0 %v329
      %v384 = vpop.f32.mrf.mxu0
      %v385 = vadd.f32 %v304, %v384
      %386 = vmatmul.f32.gmra.mxu0 %v332
      %v387 = vpop.f32.mrf.mxu0
      %v388 = vadd.f32 %v304, %v387
      %389 = vmatmul.f32.gmra.mxu0 %v335
      %v390 = vpop.f32.mrf.mxu0
      %v391 = vadd.f32 %v304, %v390
      %392 = vmatmul.f32.gmra.mxu0 %v338
      %v393 = vpop.f32.mrf.mxu0
      %v394 = vadd.f32 %v304, %v393
      %395 = vmatmul.f32.gmra.mxu0 %v341
      %v396 = vpop.f32.mrf.mxu0
      %v397 = vadd.f32 %v304, %v396
      %398 = vmatmul.f32.gmra.mxu0 %v344
      %v399 = vpop.f32.mrf.mxu0
      %v400 = vadd.f32 %v304, %v399
      %401 = vdwg.mxu0
      %v403 = vsel %vm306, %v364, 0
      %v406 = vsel %vm306, %v367, 0
      %v409 = vsel %vm306, %v370, 0
      %v412 = vsel %vm306, %v373, 0
      %v415 = vsel %vm306, %v376, 0
      %v418 = vsel %vm306, %v379, 0
      %v421 = vsel %vm306, %v382, 0
      %v424 = vsel %vm306, %v385, 0
      %v427 = vsel %vm306, %v388, 0
      %v430 = vsel %vm306, %v391, 0
      %v433 = vsel %vm306, %v394, 0
      %v436 = vsel %vm306, %v397, 0
      %v439 = vsel %vm306, %v400, 0
      %441 = vmatpush.xpose.msra.mxu0 0.0
      %442 = vmatpush.xpose.msra.mxu0 0.0
      %443 = vmatpush.xpose.msra.mxu0 0.0
      %444 = vmatpush.xpose.msra.mxu0 %v344
      %445 = vmatpush.xpose.msra.mxu0 %v341
      %446 = vmatpush.xpose.msra.mxu0 %v338
      %447 = vmatpush.xpose.msra.mxu0 %v335
      %448 = vmatpush.xpose.msra.mxu0 %v332
      %449 = vmatpush.xpose.msra.mxu0 %v329
      %450 = vmatpush.xpose.msra.mxu0 %v326
      %451 = vmatpush.xpose.msra.mxu0 %v323
      %452 = vmatpush.xpose.msra.mxu0 %v320
      %453 = vmatpush.xpose.msra.mxu0 %v317
      %454 = vmatpush.xpose.msra.mxu0 %v314
      %455 = vmatpush.xpose.msra.mxu0 %v311
      %456 = vmatpush.xpose.msra.mxu0 %v308
      %457 = vmatmul.f32.gmra.mxu0 %v403
      %v458 = vpop.f32.mrf.mxu0
      %v459 = vadd.f32 0.0, %v458
      %460 = vmatmul.f32.gmra.mxu0 %v406
      %v461 = vpop.f32.mrf.mxu0
      %v462 = vadd.f32 0.0, %v461
      %463 = vmatmul.f32.gmra.mxu0 %v409
      %v464 = vpop.f32.mrf.mxu0
      %v465 = vadd.f32 0.0, %v464
      %466 = vmatmul.f32.gmra.mxu0 %v412
      %v467 = vpop.f32.mrf.mxu0
      %v468 = vadd.f32 0.0, %v467
      %469 = vmatmul.f32.gmra.mxu0 %v415
      %v470 = vpop.f32.mrf.mxu0
      %v471 = vadd.f32 0.0, %v470
      %472 = vmatmul.f32.gmra.mxu0 %v418
      %v473 = vpop.f32.mrf.mxu0
      %v474 = vadd.f32 0.0, %v473
      %475 = vmatmul.f32.gmra.mxu0 %v421
      %v476 = vpop.f32.mrf.mxu0
      %v477 = vadd.f32 0.0, %v476
      %478 = vmatmul.f32.gmra.mxu0 %v424
      %v479 = vpop.f32.mrf.mxu0
      %v480 = vadd.f32 0.0, %v479
      %481 = vmatmul.f32.gmra.mxu0 %v427
      %v482 = vpop.f32.mrf.mxu0
      %v483 = vadd.f32 0.0, %v482
      %484 = vmatmul.f32.gmra.mxu0 %v430
      %v485 = vpop.f32.mrf.mxu0
      %v486 = vadd.f32 0.0, %v485
      %487 = vmatmul.f32.gmra.mxu0 %v433
      %v488 = vpop.f32.mrf.mxu0
      %v489 = vadd.f32 0.0, %v488
      %490 = vmatmul.f32.gmra.mxu0 %v436
      %v491 = vpop.f32.mrf.mxu0
      %v492 = vadd.f32 0.0, %v491
      %493 = vmatmul.f32.gmra.mxu0 %v439
      %v494 = vpop.f32.mrf.mxu0
      %v495 = vadd.f32 0.0, %v494
      %496 = vdwg.mxu0
      %vm497 = vcmp.gt.f32.partialorder %v285, 0.0
      %vm498 = vcmp.gt.f32.partialorder %v286, 0.0
      %vm499 = vcmp.gt.f32.partialorder %v287, 0.0
      %vm500 = vcmp.gt.f32.partialorder %v288, 0.0
      %vm501 = vcmp.gt.f32.partialorder %v289, 0.0
      %vm502 = vcmp.gt.f32.partialorder %v290, 0.0
      %vm503 = vcmp.gt.f32.partialorder %v291, 0.0
      %vm504 = vcmp.gt.f32.partialorder %v292, 0.0
      %vm505 = vcmp.gt.f32.partialorder %v293, 0.0
      %vm506 = vcmp.gt.f32.partialorder %v294, 0.0
      %vm507 = vcmp.gt.f32.partialorder %v295, 0.0
      %vm508 = vcmp.gt.f32.partialorder %v296, 0.0
      %vm509 = vcmp.gt.f32.partialorder %v297, 0.0
      %v510 = vmul.f32 %v459, %v285
      %v511 = vmul.f32 %v462, %v286
      %v512 = vmul.f32 %v465, %v287
      %v513 = vmul.f32 %v468, %v288
      %v514 = vmul.f32 %v471, %v289
      %v515 = vmul.f32 %v474, %v290
      %v516 = vmul.f32 %v477, %v291
      %v517 = vmul.f32 %v480, %v292
      %v518 = vmul.f32 %v483, %v293
      %v519 = vmul.f32 %v486, %v294
      %v520 = vmul.f32 %v489, %v295
      %v521 = vmul.f32 %v492, %v296
      %v522 = vmul.f32 %v495, %v297
      %v523 = vsel %vm497, %v510, -1e+30
      %v524 = vsel %vm498, %v511, -1e+30
      %v525 = vsel %vm499, %v512, -1e+30
      %v526 = vsel %vm500, %v513, -1e+30
      %v527 = vsel %vm501, %v514, -1e+30
      %v528 = vsel %vm502, %v515, -1e+30
      %v529 = vsel %vm503, %v516, -1e+30
      %v530 = vsel %vm504, %v517, -1e+30
      %v531 = vsel %vm505, %v518, -1e+30
      %v532 = vsel %vm506, %v519, -1e+30
      %v533 = vsel %vm507, %v520, -1e+30
      %v534 = vsel %vm508, %v521, -1e+30
      %v535 = vsel %vm509, %v522, -1e+30
      %vm536 = vcmask 850944
      %v537 = vsel %vm536, %v523, -inf
      %538 = vmax.xlane.f32.xlu0 %v537
      %v539 = vpop.xlane.xlu0 %538
      %v540 = vsel %vm536, %v524, -inf
      %541 = vmax.xlane.f32.xlu0 %v540
      %v542 = vpop.xlane.xlu0 %541
      %v543 = vsel %vm536, %v525, -inf
      %544 = vmax.xlane.f32.xlu0 %v543
      %v545 = vpop.xlane.xlu0 %544
      %v546 = vsel %vm536, %v526, -inf
      %547 = vmax.xlane.f32.xlu0 %v546
      %v548 = vpop.xlane.xlu0 %547
      %v549 = vsel %vm536, %v527, -inf
      %550 = vmax.xlane.f32.xlu0 %v549
      %v551 = vpop.xlane.xlu0 %550
      %v552 = vsel %vm536, %v528, -inf
      %553 = vmax.xlane.f32.xlu0 %v552
      %v554 = vpop.xlane.xlu0 %553
      %v555 = vsel %vm536, %v529, -inf
      %556 = vmax.xlane.f32.xlu0 %v555
      %v557 = vpop.xlane.xlu0 %556
      %v558 = vsel %vm536, %v530, -inf
      %559 = vmax.xlane.f32.xlu0 %v558
      %v560 = vpop.xlane.xlu0 %559
      %v561 = vsel %vm536, %v531, -inf
      %562 = vmax.xlane.f32.xlu0 %v561
      %v563 = vpop.xlane.xlu0 %562
      %v564 = vsel %vm536, %v532, -inf
      %565 = vmax.xlane.f32.xlu0 %v564
      %v566 = vpop.xlane.xlu0 %565
      %v567 = vsel %vm536, %v533, -inf
      %568 = vmax.xlane.f32.xlu0 %v567
      %v569 = vpop.xlane.xlu0 %568
      %v570 = vsel %vm536, %v534, -inf
      %571 = vmax.xlane.f32.xlu0 %v570
      %v572 = vpop.xlane.xlu0 %571
      %v573 = vsel %vm536, %v535, -inf
      %574 = vmax.xlane.f32.xlu0 %v573
      %v575 = vpop.xlane.xlu0 %574
      %v576 = vsub.f32 %v523, %v539
      %v577 = vsub.f32 %v524, %v542
      %v578 = vsub.f32 %v525, %v545
      %v579 = vsub.f32 %v526, %v548
      %v580 = vsub.f32 %v527, %v551
      %v581 = vsub.f32 %v528, %v554
      %v582 = vsub.f32 %v529, %v557
      %v583 = vsub.f32 %v530, %v560
      %v584 = vsub.f32 %v531, %v563
      %v585 = vsub.f32 %v532, %v566
      %v586 = vsub.f32 %v533, %v569
      %v587 = vsub.f32 %v534, %v572
      %v588 = vsub.f32 %v535, %v575
      %v589 = vmul.f32 %v576, 1.442695
      %v590 = vpow.pop %v589
      %v591 = vmul.f32 %v577, 1.442695
      %v592 = vpow.pop %v591
      %v593 = vmul.f32 %v578, 1.442695
      %v594 = vpow.pop %v593
      %v595 = vmul.f32 %v579, 1.442695
      %v596 = vpow.pop %v595
      %v597 = vmul.f32 %v580, 1.442695
      %v598 = vpow.pop %v597
      %v599 = vmul.f32 %v581, 1.442695
      %v600 = vpow.pop %v599
      %v601 = vmul.f32 %v582, 1.442695
      %v602 = vpow.pop %v601
      %v603 = vmul.f32 %v583, 1.442695
      %v604 = vpow.pop %v603
      %v605 = vmul.f32 %v584, 1.442695
      %v606 = vpow.pop %v605
      %v607 = vmul.f32 %v585, 1.442695
      %v608 = vpow.pop %v607
      %v609 = vmul.f32 %v586, 1.442695
      %v610 = vpow.pop %v609
      %v611 = vmul.f32 %v587, 1.442695
      %v612 = vpow.pop %v611
      %v613 = vmul.f32 %v588, 1.442695
      %v614 = vpow.pop %v613
      %v615 = vsel %vm536, %v590, 0.0
      %616 = vadd.xlane.f32.xlu0 %v615
      %v617 = vpop.xlane.xlu0 %616
      %v618 = vsel %vm536, %v592, 0.0
      %619 = vadd.xlane.f32.xlu0 %v618
      %v620 = vpop.xlane.xlu0 %619
      %v621 = vsel %vm536, %v594, 0.0
      %622 = vadd.xlane.f32.xlu0 %v621
      %v623 = vpop.xlane.xlu0 %622
      %v624 = vsel %vm536, %v596, 0.0
      %625 = vadd.xlane.f32.xlu0 %v624
      %v626 = vpop.xlane.xlu0 %625
      %v627 = vsel %vm536, %v598, 0.0
      %628 = vadd.xlane.f32.xlu0 %v627
      %v629 = vpop.xlane.xlu0 %628
      %v630 = vsel %vm536, %v600, 0.0
      %631 = vadd.xlane.f32.xlu0 %v630
      %v632 = vpop.xlane.xlu0 %631
      %v633 = vsel %vm536, %v602, 0.0
      %634 = vadd.xlane.f32.xlu0 %v633
      %v635 = vpop.xlane.xlu0 %634
      %v636 = vsel %vm536, %v604, 0.0
      %637 = vadd.xlane.f32.xlu0 %v636
      %v638 = vpop.xlane.xlu0 %637
      %v639 = vsel %vm536, %v606, 0.0
      %640 = vadd.xlane.f32.xlu0 %v639
      %v641 = vpop.xlane.xlu0 %640
      %v642 = vsel %vm536, %v608, 0.0
      %643 = vadd.xlane.f32.xlu0 %v642
      %v644 = vpop.xlane.xlu0 %643
      %v645 = vsel %vm536, %v610, 0.0
      %646 = vadd.xlane.f32.xlu0 %v645
      %v647 = vpop.xlane.xlu0 %646
      %v648 = vsel %vm536, %v612, 0.0
      %649 = vadd.xlane.f32.xlu0 %v648
      %v650 = vpop.xlane.xlu0 %649
      %v651 = vsel %vm536, %v614, 0.0
      %652 = vadd.xlane.f32.xlu0 %v651
      %v653 = vpop.xlane.xlu0 %652
      %v654 = vmul.f32 %v590, %v285
      %v655 = vmul.f32 %v592, %v286
      %v656 = vmul.f32 %v594, %v287
      %v657 = vmul.f32 %v596, %v288
      %v658 = vmul.f32 %v598, %v289
      %v659 = vmul.f32 %v600, %v290
      %v660 = vmul.f32 %v602, %v291
      %v661 = vmul.f32 %v604, %v292
      %v662 = vmul.f32 %v606, %v293
      %v663 = vmul.f32 %v608, %v294
      %v664 = vmul.f32 %v610, %v295
      %v665 = vmul.f32 %v612, %v296
      %v666 = vmul.f32 %v614, %v297
      %v668 = vsel %vm536, %v654, 0
      %v671 = vsel %vm536, %v655, 0
      %v674 = vsel %vm536, %v656, 0
      %v677 = vsel %vm536, %v657, 0
      %v680 = vsel %vm536, %v658, 0
      %v683 = vsel %vm536, %v659, 0
      %v686 = vsel %vm536, %v660, 0
      %v689 = vsel %vm536, %v661, 0
      %v692 = vsel %vm536, %v662, 0
      %v695 = vsel %vm536, %v663, 0
      %v698 = vsel %vm536, %v664, 0
      %v701 = vsel %vm536, %v665, 0
      %v704 = vsel %vm536, %v666, 0
      %706 = vmatpush.msra.mxu0 0.0
      %707 = vmatpush.msra.mxu0 0.0
      %708 = vmatpush.msra.mxu0 0.0
      %709 = vmatpush.msra.mxu0 %v284
      %710 = vmatpush.msra.mxu0 %v283
      %711 = vmatpush.msra.mxu0 %v282
      %712 = vmatpush.msra.mxu0 %v281
      %713 = vmatpush.msra.mxu0 %v280
      %714 = vmatpush.msra.mxu0 %v279
      %715 = vmatpush.msra.mxu0 %v278
      %716 = vmatpush.msra.mxu0 %v277
      %717 = vmatpush.msra.mxu0 %v276
      %718 = vmatpush.msra.mxu0 %v275
      %719 = vmatpush.msra.mxu0 %v274
      %720 = vmatpush.msra.mxu0 %v273
      %721 = vmatpush.msra.mxu0 %v272
      %722 = vmatmul.f32.gmra.mxu0 %v668
      %v723 = vpop.f32.mrf.mxu0
      %v724 = vadd.f32 0.0, %v723
      %725 = vmatmul.f32.gmra.mxu0 %v671
      %v726 = vpop.f32.mrf.mxu0
      %v727 = vadd.f32 0.0, %v726
      %728 = vmatmul.f32.gmra.mxu0 %v674
      %v729 = vpop.f32.mrf.mxu0
      %v730 = vadd.f32 0.0, %v729
      %731 = vmatmul.f32.gmra.mxu0 %v677
      %v732 = vpop.f32.mrf.mxu0
      %v733 = vadd.f32 0.0, %v732
      %734 = vmatmul.f32.gmra.mxu0 %v680
      %v735 = vpop.f32.mrf.mxu0
      %v736 = vadd.f32 0.0, %v735
      %737 = vmatmul.f32.gmra.mxu0 %v683
      %v738 = vpop.f32.mrf.mxu0
      %v739 = vadd.f32 0.0, %v738
      %740 = vmatmul.f32.gmra.mxu0 %v686
      %v741 = vpop.f32.mrf.mxu0
      %v742 = vadd.f32 0.0, %v741
      %743 = vmatmul.f32.gmra.mxu0 %v689
      %v744 = vpop.f32.mrf.mxu0
      %v745 = vadd.f32 0.0, %v744
      %746 = vmatmul.f32.gmra.mxu0 %v692
      %v747 = vpop.f32.mrf.mxu0
      %v748 = vadd.f32 0.0, %v747
      %749 = vmatmul.f32.gmra.mxu0 %v695
      %v750 = vpop.f32.mrf.mxu0
      %v751 = vadd.f32 0.0, %v750
      %752 = vmatmul.f32.gmra.mxu0 %v698
      %v753 = vpop.f32.mrf.mxu0
      %v754 = vadd.f32 0.0, %v753
      %755 = vmatmul.f32.gmra.mxu0 %v701
      %v756 = vpop.f32.mrf.mxu0
      %v757 = vadd.f32 0.0, %v756
      %758 = vmatmul.f32.gmra.mxu0 %v704
      %v759 = vpop.f32.mrf.mxu0
      %v760 = vadd.f32 0.0, %v759
      %761 = vdwg.mxu0
      %v762 = vrcp.pop %v617
      %v763 = vrcp.pop %v620
      %v764 = vrcp.pop %v623
      %v765 = vrcp.pop %v626
      %v766 = vrcp.pop %v629
      %v767 = vrcp.pop %v632
      %v768 = vrcp.pop %v635
      %v769 = vrcp.pop %v638
      %v770 = vrcp.pop %v641
      %v771 = vrcp.pop %v644
      %v772 = vrcp.pop %v647
      %v773 = vrcp.pop %v650
      %v774 = vrcp.pop %v653
      %v775 = vmul.f32 %v724, %v762
      %v776 = vmul.f32 %v727, %v763
      %v777 = vmul.f32 %v730, %v764
      %v778 = vmul.f32 %v733, %v765
      %v779 = vmul.f32 %v736, %v766
      %v780 = vmul.f32 %v739, %v767
      %v781 = vmul.f32 %v742, %v768
      %v782 = vmul.f32 %v745, %v769
      %v783 = vmul.f32 %v748, %v770
      %v784 = vmul.f32 %v751, %v771
      %v785 = vmul.f32 %v754, %v772
      %v786 = vmul.f32 %v757, %v773
      %v787 = vmul.f32 %v760, %v774
      %v788 = vld [vmem:[%s4] sm:$0xff]
      %v789 = vld [vmem:[%s4 + $0x8] sm:$0xff]
      %v790 = vld [vmem:[%s4 + $0x10] sm:$0xff]
      %v791 = vld [vmem:[%s4 + $0x18] sm:$0xff]
      %v792 = vld [vmem:[%s5] sm:$0x1]
      %v794 = vperm.slane %v792, 0
      %v797 = vsel %vm306, %v775, 0
      %v800 = vsel %vm306, %v776, 0
      %v803 = vsel %vm306, %v777, 0
      %v806 = vsel %vm306, %v778, 0
      %v809 = vsel %vm306, %v779, 0
      %v812 = vsel %vm306, %v780, 0
      %v815 = vsel %vm306, %v781, 0
      %v818 = vsel %vm306, %v782, 0
      %v821 = vsel %vm306, %v783, 0
      %v824 = vsel %vm306, %v784, 0
      %v827 = vsel %vm306, %v785, 0
      %v830 = vsel %vm306, %v786, 0
      %v833 = vsel %vm306, %v787, 0
      %835 = vmatpush.msra.mxu0 0.0
      %836 = vmatpush.msra.mxu0 0.0
      %837 = vmatpush.msra.mxu0 0.0
      %838 = vmatpush.msra.mxu0 0.0
      %839 = vmatpush.msra.mxu0 0.0
      %840 = vmatpush.msra.mxu0 0.0
      %841 = vmatpush.msra.mxu0 0.0
      %842 = vmatpush.msra.mxu0 0.0
      %843 = vmatpush.msra.mxu0 0.0
      %844 = vmatpush.msra.mxu0 0.0
      %845 = vmatpush.msra.mxu0 0.0
      %846 = vmatpush.msra.mxu0 0.0
      %847 = vmatpush.msra.mxu0 %v791
      %848 = vmatpush.msra.mxu0 %v790
      %849 = vmatpush.msra.mxu0 %v789
      %850 = vmatpush.msra.mxu0 %v788
      %851 = vmatmul.f32.gmra.mxu0 %v797
      %v852 = vpop.f32.mrf.mxu0
      %v853 = vadd.f32 %v794, %v852
      %854 = vmatmul.f32.gmra.mxu0 %v800
      %v855 = vpop.f32.mrf.mxu0
      %v856 = vadd.f32 %v794, %v855
      %857 = vmatmul.f32.gmra.mxu0 %v803
      %v858 = vpop.f32.mrf.mxu0
      %v859 = vadd.f32 %v794, %v858
      %860 = vmatmul.f32.gmra.mxu0 %v806
      %v861 = vpop.f32.mrf.mxu0
      %v862 = vadd.f32 %v794, %v861
      %863 = vmatmul.f32.gmra.mxu0 %v809
      %v864 = vpop.f32.mrf.mxu0
      %v865 = vadd.f32 %v794, %v864
      %866 = vmatmul.f32.gmra.mxu0 %v812
      %v867 = vpop.f32.mrf.mxu0
      %v868 = vadd.f32 %v794, %v867
      %869 = vmatmul.f32.gmra.mxu0 %v815
      %v870 = vpop.f32.mrf.mxu0
      %v871 = vadd.f32 %v794, %v870
      %872 = vmatmul.f32.gmra.mxu0 %v818
      %v873 = vpop.f32.mrf.mxu0
      %v874 = vadd.f32 %v794, %v873
      %875 = vmatmul.f32.gmra.mxu0 %v821
      %v876 = vpop.f32.mrf.mxu0
      %v877 = vadd.f32 %v794, %v876
      %878 = vmatmul.f32.gmra.mxu0 %v824
      %v879 = vpop.f32.mrf.mxu0
      %v880 = vadd.f32 %v794, %v879
      %881 = vmatmul.f32.gmra.mxu0 %v827
      %v882 = vpop.f32.mrf.mxu0
      %v883 = vadd.f32 %v794, %v882
      %884 = vmatmul.f32.gmra.mxu0 %v830
      %v885 = vpop.f32.mrf.mxu0
      %v886 = vadd.f32 %v794, %v885
      %887 = vmatmul.f32.gmra.mxu0 %v833
      %v888 = vpop.f32.mrf.mxu0
      %v889 = vadd.f32 %v794, %v888
      %890 = vdwg.mxu0
      %891 = vst.msk [vmem:[%s271] sm:$0xff] %vm306, %v853
      %892 = vst.msk [vmem:[%s271 + $0x8] sm:$0xff] %vm306, %v856
      %893 = vst.msk [vmem:[%s271 + $0x10] sm:$0xff] %vm306, %v859
      %894 = vst.msk [vmem:[%s271 + $0x18] sm:$0xff] %vm306, %v862
      %895 = vst.msk [vmem:[%s271 + $0x20] sm:$0xff] %vm306, %v865
      %896 = vst.msk [vmem:[%s271 + $0x28] sm:$0xff] %vm306, %v868
      %897 = vst.msk [vmem:[%s271 + $0x30] sm:$0xff] %vm306, %v871
      %898 = vst.msk [vmem:[%s271 + $0x38] sm:$0xff] %vm306, %v874
      %899 = vst.msk [vmem:[%s271 + $0x40] sm:$0xff] %vm306, %v877
      %900 = vst.msk [vmem:[%s271 + $0x48] sm:$0xff] %vm306, %v880
      %901 = vst.msk [vmem:[%s271 + $0x50] sm:$0xff] %vm306, %v883
      %902 = vst.msk [vmem:[%s271 + $0x58] sm:$0xff] %vm306, %v886
      %903 = vst.msk [vmem:[%s271 + $0x60] sm:$0xff] %vm306, %v889
      %p904 = scmp.lt.s32.totalorder %s17, 3
      %s905 = scalar_select %p904, %s17, 3
      %s906 = smul.addr %s905, 13
      %s907 = smul.addr %s906, 8
      %s908 = scalar_lea.vmem %s6, %s907
      // Predicated region
      $region45: #{group_change_forward.1} parent=43 // pred_check
        %p909 = pneg %p171
      $region46: #{group_change_forward.1} parent=43 // pred_check_branch
        %911 = sbr.rel (%p909) target = $region48
      $region47: #{group_change_forward.1} parent=43 // pred_region
        _
      $region48: #{group_change_forward.1} parent=43 // pred_fallthru
        _
    $region44: #{group_change_forward.1} parent=5 // pred_fallthru
      _
    %p912 = scmp.le.s32.totalorder 2, %s12
    // Predicated region
    $region49: #{group_change_forward.1} parent=5 // pred_check
      %p913 = pneg %p912
    $region50: #{group_change_forward.1} parent=5 // pred_check_branch
      %915 = sbr.rel (%p913) target = $region52
    $region51: #{group_change_forward.1} parent=5 // pred_region
      %s916 = ssub.s32 %s12, 2
      // Predicated region
      $region53: #{group_change_forward.1} parent=51 // pred_check
        %p917 = pneg %p177
      $region54: #{group_change_forward.1} parent=51 // pred_check_branch
        %919 = sbr.rel (%p917) target = $region56
      $region55: #{group_change_forward.1} parent=51 // pred_region
        %p920 = scmp.lt.s32.totalorder %s18, 3
        %s921 = scalar_select %p920, %s18, 3
        %s922 = smul.addr %s921, 13
        %s923 = smul.addr %s922, 8
        %s924 = scalar_lea.vmem %s6, %s923
      $region56: #{group_change_forward.1} parent=51 // pred_fallthru
        _
    $region52: #{group_change_forward.1} parent=5 // pred_fallthru
      _
  $region6: #{group_change_forward.1} parent=0 // loop_footer
    %s16 = sadd.s32 1, %s12
  $region7: #{group_change_forward.1} parent=0 // loop_footer_branch
    %11 = sbr.rel target = $region3
  $region8: #{group_change_forward.1} parent=0 // loop_exit
    _

</llo_original>
